<compile_context>
chip_gen: v7x
topology: tpu7x:2x2x1
jax: 0.10.0
libtpu: 0.0.40
codegen_flags: <defaults>
</compile_context>

<pallas_src>
from typing import NamedTuple, Optional

import jax
import jax.numpy as jnp
from jax.experimental import pallas as pl
from jax.experimental.pallas import tpu as pltpu


class Plan(NamedTuple):
    tm: int
    tk: int
    tn: int
    n_pad: int
    k_pad: int
    d_pad: int
    emb_resident: bool
    vmem_limit: int


def _vmem_capacity_bytes() -> int:
    try:
        return int(pltpu.get_tpu_info().vmem_capacity_bytes)
    except Exception:
        return 64 << 20  # v7x per-core capacity: safe lower bound on any generation


def _balanced_tile(dim: int, cap: int, unit: int) -> int:
    """Full extent if it fits under cap, else ~equal blocks rounded up to `unit`."""
    if dim <= cap:
        return dim
    nblocks = pl.cdiv(dim, cap)
    return min(cap, pl.cdiv(pl.cdiv(dim, nblocks), unit) * unit)


def plan_tiles(adj_shape, emb_shape, *, adj_dtype=jnp.float32, emb_dtype=jnp.float32,
               out_dtype=jnp.float32, tm_cap=1024, tk_cap=1024, tn_cap=512) -> Plan:
    """Pick tile sizes whose double-buffered footprint fits this generation's VMEM."""
    N, K = adj_shape
    K2, D = emb_shape
    assert K == K2, "adj columns must match embeds rows"
    adj_bytes = jnp.dtype(adj_dtype).itemsize
    emb_bytes = jnp.dtype(emb_dtype).itemsize
    out_bytes = jnp.dtype(out_dtype).itemsize

    vmem_cap = _vmem_capacity_bytes()
    budget = int(vmem_cap * 0.75)  # leave headroom for Mosaic-internal scratch

    # Lane axis (D): full extent for typical GCN hidden dims, else 512-wide tiles.
    tn = _balanced_tile(D, tn_cap, 128)
    d_pad = tn * pl.cdiv(D, tn)

    while True:
        # Row axis (M): keep >= 2 row blocks whenever N allows it so the "parallel"
        # i axis can shard across the two TensorCores of a v7x chip.
        if N < 256:
            tm = N
        else:
            nbi = max(2, pl.cdiv(N, tm_cap))
            tm = min(tm_cap, pl.cdiv(pl.cdiv(N, nbi), 8) * 8)
        n_pad = tm * pl.cdiv(N, tm)

        # Reduction axis (K): lane dim of the adj block -> multiple of 128 unless full.
        tk = _balanced_tile(K, tk_cap, 128)
        k_pad = tk * pl.cdiv(K, tk)
        nbk = k_pad // tk

        # Keep the whole embeds panel VMEM-resident across the row axis when small
        # enough (then it is DMA'd once instead of once per row block).
        emb_resident = nbk > 1 and 2 * k_pad * tn * emb_bytes <= budget // 3

        emb_vmem = 2 * (k_pad if emb_resident else tk) * tn * emb_bytes
        est = (2 * tm * tk * adj_bytes        # double-buffered adj tile (stored dtype)
               + emb_vmem                     # embeds panel / streamed tile
               + 2 * tm * tn * out_bytes      # k-resident output tile
               + tm * tn * 4)                 # f32 scratch accumulator (worst case)
        if est <= budget or (tm_cap <= 128 and tk_cap <= 128):
            break
        if tk_cap >= tm_cap and tk_cap > 128:
            tk_cap //= 2
        elif tm_cap > 128:
            tm_cap //= 2
        else:
            tk_cap = max(128, tk_cap // 2)

    vmem_limit = min(int(vmem_cap * 0.9), max(int(est * 1.5), 32 << 20))
    return Plan(tm, tk, tn, n_pad, k_pad, d_pad, emb_resident, vmem_limit)


def build_block_schedule(adj, plan: Plan):
    """Per-row-block list of nonzero K-block indices (+ counts) for scalar prefetch.

    Costs one extra pass over adj; build it once and reuse it across layers / training
    steps (a GCN's adjacency is fixed) so the dense-stream saving is net.  Padding
    entries repeat the last valid block index so their input DMAs dedup away.
    """
    N, K = adj.shape
    tm, tk, n_pad, k_pad = plan.tm, plan.tk, plan.n_pad, plan.k_pad
    a = adj
    if (n_pad, k_pad) != (N, K):
        a = jnp.pad(a, ((0, n_pad - N), (0, k_pad - K)))
    nbi, nbk = n_pad // tm, k_pad // tk
    nz = jnp.any((a != 0).reshape(nbi, tm, nbk, tk), axis=(1, 3))
    counts = jnp.sum(nz, axis=1, dtype=jnp.int32)
    # Nonzero block indices first (ascending), then repeats of the last valid index.
    order = jnp.argsort(jnp.where(nz, 0, 1).astype(jnp.int32), axis=1,
                        stable=True).astype(jnp.int32)
    pos = jnp.minimum(jnp.arange(nbk, dtype=jnp.int32)[None, :],
                      jnp.maximum(counts - 1, 0)[:, None])
    kidx = jnp.take_along_axis(order, pos, axis=1)
    return kidx, counts


def _make_spmm_kernel(compute_dtype, emb_resident, use_scratch):
    def kernel(kidx_ref, cnt_ref, adj_ref, emb_ref, out_ref, *scratch):
        i = pl.program_id(0)
        s = pl.program_id(2)
        acc_ref = scratch[0] if use_scratch else out_ref

        @pl.when(s == 0)
        def _init():
            acc_ref[...] = jnp.zeros_like(acc_ref)

        # Only real (nonzero) adjacency blocks contribute; padded schedule steps are
        # skipped (their DMAs were dedup'd by the repeated block index).
        @pl.when(s < cnt_ref[i])
        def _accumulate():
            if emb_resident:
                e = emb_ref[kidx_ref[i, s]]      # (tk, tn) slab of the resident panel
            else:
                e = emb_ref[...]                 # streamed (tk, tn) tile
            acc_ref[...] += jnp.dot(
                adj_ref[...].astype(compute_dtype),
                e.astype(compute_dtype),
                preferred_element_type=jnp.float32,
            )

        if use_scratch:
            @pl.when(s == pl.num_programs(2) - 1)
            def _finalize():
                out_ref[...] = acc_ref[...].astype(out_ref.dtype)

    return kernel


def gcn_layer(adj, embeds, *, plan: Optional[Plan] = None, schedule=None,
              compute_dtype=jnp.bfloat16, tm_cap=1024, tk_cap=1024, tn_cap=512):
    """out = adj @ embeds  (torch.spmm semantics with a dense-stored adjacency).

    compute_dtype: MXU input dtype.  The default bf16 rounds the per-tile inputs on the
    VPU while accumulation stays f32 — a documented deviation from torch.spmm's exact
    f32 semantics; pass jnp.float32 for exact semantics.
    """
    N, K = adj.shape
    K2, D = embeds.shape
    assert K == K2, "adj columns must match embeds rows"
    out_dtype = embeds.dtype

    if plan is None:
        plan = plan_tiles(adj.shape, embeds.shape, adj_dtype=adj.dtype,
                          emb_dtype=embeds.dtype, out_dtype=out_dtype,
                          tm_cap=tm_cap, tk_cap=tk_cap, tn_cap=tn_cap)
    tm, tk, tn = plan.tm, plan.tk, plan.tn
    n_pad, k_pad, d_pad = plan.n_pad, plan.k_pad, plan.d_pad
    nbi, nbj, nbk = n_pad // tm, d_pad // tn, k_pad // tk

    if schedule is None:
        schedule = build_block_schedule(adj, plan)
    kidx, counts = schedule
    assert kidx.shape == (nbi, nbk) and counts.shape == (nbi,), \
        "block schedule does not match the tiling plan"
    kidx = kidx.astype(jnp.int32)
    counts = counts.astype(jnp.int32)

    # Pad only when the shapes genuinely require it (an extra HBM round-trip for adj;
    # aligned graph sizes avoid it).  TODO(synk): route an unavoidable pad/convert
    # through allow_input_fusion so XLA fuses it into the pallas_call input DMAs.
    adj_p = adj if (n_pad, k_pad) == (N, K) else jnp.pad(
        adj, ((0, n_pad - N), (0, k_pad - K)))
    emb_p = embeds if (k_pad, d_pad) == (K, D) else jnp.pad(
        embeds, ((0, k_pad - K), (0, d_pad - D)))

    # Only visit k steps that can hold a nonzero block for some row block.
    try:
        kgrid = max(1, int(counts.max()))
    except Exception:  # schedule is traced (e.g. under jit): keep the full extent
        kgrid = nbk

    if plan.emb_resident:
        emb_in = emb_p.reshape(nbk, tk, d_pad)
        emb_spec = pl.BlockSpec((nbk, tk, tn), lambda i, j, s, kb, cn: (0, 0, j))
    else:
        emb_in = emb_p
        emb_spec = pl.BlockSpec((tk, tn), lambda i, j, s, kb, cn: (kb[i, s], j))

    use_scratch = jnp.dtype(out_dtype) != jnp.dtype(jnp.float32)
    kernel = _make_spmm_kernel(compute_dtype, plan.emb_resident, use_scratch)
    scratch = [pltpu.VMEM((tm, tn), jnp.float32)] if use_scratch else []

    out = pl.pallas_call(
        kernel,
        out_shape=jax.ShapeDtypeStruct((n_pad, d_pad), out_dtype),
        grid_spec=pltpu.PrefetchScalarGridSpec(
            num_scalar_prefetch=2,
            grid=(nbi, nbj, kgrid),  # reduction axis last
            in_specs=[
                pl.BlockSpec((tm, tk), lambda i, j, s, kb, cn: (i, kb[i, s])),  # adj
                emb_spec,                                                        # embeds
            ],
            out_specs=pl.BlockSpec((tm, tn), lambda i, j, s, kb, cn: (i, j)),
            scratch_shapes=scratch,
        ),
        compiler_params=pltpu.CompilerParams(
            dimension_semantics=("parallel", "parallel", "arbitrary"),
            vmem_limit_bytes=plan.vmem_limit,
        ),
    )(kidx, counts, adj_p, emb_in)

    if (n_pad, d_pad) != (N, D):
        out = out[:N, :D]
    return out


if __name__ == "__main__":
    key = jax.random.PRNGKey(0)
    k_adj, k_emb, k_mask = jax.random.split(key, 3)

    N, D = 256, 128  # N nodes, D-dim embeddings

    # Sparse-ish adjacency stored densely (torch.spmm semantics == dense matmul).
    mask = (jax.random.uniform(k_mask, (N, N)) < 0.05).astype(jnp.float32)
    vals = jax.random.uniform(k_adj, (N, N), dtype=jnp.float32)
    adj = mask * vals
    embeds = jax.random.normal(k_emb, (N, D), dtype=jnp.float32)

    # Recommended usage: plan + block-sparse schedule built once, reused every layer.
    plan = plan_tiles(adj.shape, embeds.shape, adj_dtype=adj.dtype,
                      emb_dtype=embeds.dtype, out_dtype=embeds.dtype)
    sched = build_block_schedule(adj, plan)
    out = gcn_layer(adj, embeds, plan=plan, schedule=sched)
    out = jax.block_until_ready(out)
    assert out.shape == (N, D)
    assert out.dtype == jnp.float32

    # Second config exercises the multi-k-block + VMEM-resident-embeds path.
    out2 = gcn_layer(adj, embeds, tm_cap=128, tk_cap=128)
    out2 = jax.block_until_ready(out2)

    # Reference with the same bf16 rounding of the inputs (accumulation in f32).
    adj_bf = adj.astype(jnp.bfloat16).astype(jnp.float32)
    emb_bf = embeds.astype(jnp.bfloat16).astype(jnp.float32)
    ref_bf = adj_bf @ emb_bf
    assert jnp.allclose(out, ref_bf, atol=1e-3, rtol=1e-3)
    assert jnp.allclose(out2, ref_bf, atol=1e-3, rtol=1e-3)

    # Sanity check against the exact f32 product (looser tolerance for bf16 inputs).
    ref_f32 = adj @ embeds
    assert jnp.allclose(out, ref_f32, atol=5e-2, rtol=5e-2)

    print("KERNEL_OK")
</pallas_src>

<mosaic_0001>
module attributes {stable_mosaic.version = 11 : i64} {
  func.func @kernel(%arg0: i32, %arg1: i32, %arg2: i32, %arg3: memref<2x1xi32, #tpu.memory_space<smem>>, %arg4: memref<2xi32, #tpu.memory_space<smem>>, %arg5: memref<128x256xf32, #tpu.memory_space<vmem>>, %arg6: memref<256x128xf32, #tpu.memory_space<vmem>>, %arg7: memref<128x128xf32, #tpu.memory_space<vmem>>) attributes {dimension_semantics = [#tpu.dimension_semantics<parallel>, #tpu.dimension_semantics<parallel>, #tpu.dimension_semantics<arbitrary>], iteration_bounds = array<i64: 2, 1, 1>, scalar_prefetch = 2 : i64, scratch_operands = 0 : i64, tpu.core_type = #tpu.core_type<tc>, window_params = [{transform_indices = @transform_0, window_bounds = array<i64: 128, 256>}, {transform_indices = @transform_1, window_bounds = array<i64: 256, 128>}, {transform_indices = @transform_2, window_bounds = array<i64: 128, 128>}]} {
    %c0_i32 = arith.constant 0 : i32
    %0 = arith.cmpi eq, %arg2, %c0_i32 : i32
    %1 = arith.extui %0 : i1 to i32
    %c0_i32_0 = arith.constant 0 : i32
    %2 = arith.cmpi ne, %1, %c0_i32_0 : i32
    scf.if %2 {
      %cst = arith.constant 0.000000e+00 : f32
      %8 = vector.broadcast %cst : f32 to vector<128x128xf32>
      %c0 = arith.constant 0 : index
      %c0_2 = arith.constant 0 : index
      %9 = vector.load %arg7[%c0, %c0_2] : memref<128x128xf32, #tpu.memory_space<vmem>>, vector<128x128xf32>
      tpu.vector_store %arg7[%c0, %c0_2], %8 {strides = array<i32>} : memref<128x128xf32, #tpu.memory_space<vmem>>, vector<128x128xf32>,
    } else {
    }
    %3 = arith.index_cast %arg0 : i32 to index
    %4 = memref.load %arg4[%3] : memref<2xi32, #tpu.memory_space<smem>>
    %5 = arith.cmpi slt, %arg2, %4 : i32
    %6 = arith.extui %5 : i1 to i32
    %c0_i32_1 = arith.constant 0 : i32
    %7 = arith.cmpi ne, %6, %c0_i32_1 : i32
    scf.if %7 {
      %c0 = arith.constant 0 : index
      %c0_2 = arith.constant 0 : index
      %8 = vector.load %arg6[%c0, %c0_2] : memref<256x128xf32, #tpu.memory_space<vmem>>, vector<256x128xf32>
      %c0_3 = arith.constant 0 : index
      %c0_4 = arith.constant 0 : index
      %9 = vector.load %arg7[%c0_3, %c0_4] : memref<128x128xf32, #tpu.memory_space<vmem>>, vector<128x128xf32>
      %c0_5 = arith.constant 0 : index
      %c0_6 = arith.constant 0 : index
      %10 = vector.load %arg5[%c0_5, %c0_6] : memref<128x256xf32, #tpu.memory_space<vmem>>, vector<128x256xf32>
      %11 = arith.truncf %10 : vector<128x256xf32> to vector<128x256xbf16>
      %12 = arith.truncf %8 : vector<256x128xf32> to vector<256x128xbf16>
      %cst = arith.constant dense<0.000000e+00> : vector<128x128xf32>
      %13 = tpu.matmul %11, %12, %cst {dimension_numbers = #tpu.dot_dimension_numbers<[1], [0], [0], [1], [0, 0, 1, 1], [], []>} : vector<128x256xbf16>, vector<256x128xbf16>, vector<128x128xf32> -> vector<128x128xf32>
      %14 = arith.addf %9, %13 : vector<128x128xf32>
      %c0_7 = arith.constant 0 : index
      %c0_8 = arith.constant 0 : index
      %15 = vector.load %arg7[%c0_7, %c0_8] : memref<128x128xf32, #tpu.memory_space<vmem>>, vector<128x128xf32>
      tpu.vector_store %arg7[%c0_7, %c0_8], %14 {strides = array<i32>} : memref<128x128xf32, #tpu.memory_space<vmem>>, vector<128x128xf32>,
    } else {
    }
    return
  }
  func.func @transform_0(%arg0: i32, %arg1: i32, %arg2: i32, %arg3: memref<2x1xi32, #tpu.memory_space<smem>>, %arg4: memref<2xi32, #tpu.memory_space<smem>>) -> (i32, i32) {
    %0 = arith.index_cast %arg0 : i32 to index
    %1 = arith.index_cast %arg2 : i32 to index
    %2 = memref.load %arg3[%0, %1] : memref<2x1xi32, #tpu.memory_space<smem>>
    %c0_i32 = arith.constant 0 : i32
    return %arg0, %2 : i32, i32
  }
  func.func @transform_1(%arg0: i32, %arg1: i32, %arg2: i32, %arg3: memref<2x1xi32, #tpu.memory_space<smem>>, %arg4: memref<2xi32, #tpu.memory_space<smem>>) -> (i32, i32) {
    %0 = arith.index_cast %arg0 : i32 to index
    %1 = arith.index_cast %arg2 : i32 to index
    %2 = memref.load %arg3[%0, %1] : memref<2x1xi32, #tpu.memory_space<smem>>
    %c0_i32 = arith.constant 0 : i32
    return %2, %arg1 : i32, i32
  }
  func.func @transform_2(%arg0: i32, %arg1: i32, %arg2: i32, %arg3: memref<2x1xi32, #tpu.memory_space<smem>>, %arg4: memref<2xi32, #tpu.memory_space<smem>>) -> (i32, i32) {
    %c0_i32 = arith.constant 0 : i32
    return %arg0, %arg1 : i32, i32
  }
}

</mosaic_0001>

<llo_original>
// kernel: tpu_custom_call.1
$region0: #{tpu_custom_call.1}
  #allocation0 [shape = 'u32[]', space=smem, size = 0x4, offset = 0x4, fixed_abs, tag = 'smem constant byte address 0x4 - core index']
  #allocation1 [shape = 'u32[144,128]{1,0:T(1,128)}', space=vmem, size = 0x12000, scoped, tag = 'internal scratch']
  #allocation2 [shape = 's32[1]{0}', space=sflag, size = 0x4, scoped, tag = 'scoped memory for tpu_custom_call.1']
  #allocation3 [shape = 'u8[1024]{0}', space=smem, size = 0x400, scoped, tag = 'prefetched SMEM operand 0']
  #allocation4 [shape = 'u8[512]{0}', space=smem, size = 0x200, scoped, tag = 'prefetched SMEM operand 1']
  %s0 = inlined_call_operand.vmem [shape: s32[2,1], index: 0, kind: input, shape index: {}]
  %s1 = inlined_call_operand.vmem [shape: s32[2], index: 1, kind: input, shape index: {}]
  %s2 = inlined_call_operand.hbm [shape: f32[256,256], index: 2, kind: input, shape index: {}]
  %s3 = inlined_call_operand.hbm [shape: f32[256,128], index: 3, kind: input, shape index: {}]
  %s4 = inlined_call_operand.hbm [shape: f32[256,128], index: 4, kind: output, shape index: {}]
  %s5 = sld [smem:[#allocation0]]
  $region57: #{tpu_custom_call.1} parent=0
    _
  %s7 = ssub.s32 1, %s5
  %s8 = scalar_select 0, %s7, %s5
  %s9 = sshll.u32 %s0, 4
  %s10 = int_to_ptr.vmem [resolvable:$true] %s9
  %12 = dma.vmem_to_smem %s10, 32, [#allocation3], [#allocation2]
  %s13 = sshll.u32 %s1, 4
  %s14 = int_to_ptr.vmem [resolvable:$true] %s13
  %16 = dma.vmem_to_smem %s14, 16, [#allocation4], [#allocation2]
  %17 = dma.done [#allocation2], 48
  %18 = sfence
  $region1: #{tpu_custom_call.1} parent=0
    #allocation5 [shape = 'u8[262144]{0}', space=vmem, size = 0x40000, scoped, tag = 'input window, operand 2']
    #allocation6 [shape = 's32[2]{0}', space=sflag, size = 0x8, scoped, tag = 'scoped memory for tpu_custom_call.1']
    #allocation7 [shape = 's32[2]{0}', space=sflag, size = 0x8, scoped, tag = 'scoped memory for tpu_custom_call.1']
    #allocation8 [shape = 'u8[262144]{0}', space=vmem, size = 0x40000, scoped, tag = 'input window, operand 3']
    #allocation9 [shape = 's32[2]{0}', space=sflag, size = 0x8, scoped, tag = 'scoped memory for tpu_custom_call.1']
    #allocation10 [shape = 'u8[131072]{0}', space=vmem, size = 0x20000, scoped, tag = 'output window, operand 0']
    %19 = vsyncpa [#allocation6], 0
    %s20 = scalar_lea.sflag [#allocation6], 1
    %21 = vsyncpa %s20, 0
    %22 = vsyncpa [#allocation9], 0
    %s23 = scalar_lea.sflag [#allocation9], 1
    %24 = vsyncpa %s23, 0
    %25 = vsyncpa [#allocation7], 0
    %s26 = scalar_lea.sflag [#allocation7], 1
    %27 = vsyncpa %s26, 0
    loop: start=0, step=1, limit=4
    $region2: #{tpu_custom_call.1} parent=1 // loop_pre_header
      _
    $region3: #{tpu_custom_call.1} parent=1 // loop_header
      %s29 = sphi 0, %s33
      %p30 = scmp.ge.s32.totalorder %s29, 4
      %s36 = sphi 0, %s55
      %s37 = sphi 0, %s51
      %s38 = sphi 0, %s47
      %s39 = sphi 0, %s36
      %s40 = sphi 0, %s37
      %s41 = sphi 0, %s38
      %s42 = sphi 0, %s39
      %s43 = sphi 0, %s40
      %s44 = sphi 0, %s41
      %s76 = sphi 0, %s78
      %s79 = sphi 0, %s76
      %s80 = sphi 0, %s79
      %s96 = sphi 0, %s80
      %s120 = sphi 0, %s122
      %s123 = sphi 0, %s120
      %s124 = sphi 0, %s123
      %s140 = sphi 0, %s124
      %s148 = sphi 0, %s150
      %s151 = sphi 0, %s148
      %s152 = sphi 0, %s151
      %s168 = sphi 0, %s152
    $region4: #{tpu_custom_call.1} parent=1 // loop_header_branch
      %32 = sbr.rel (%p30) target = $region8
    $region5: #{tpu_custom_call.1} parent=1 // loop_body
      %s34 = ssub.s32 %s29, 1
      %s35 = ssub.s32 %s29, 2
      %s45 = sadd.s32 1, %s38
      %p46 = scmp.ge.s32.totalorder %s45, 1
      %s47 = scalar_select %p46, 0, %s45
      %s48 = sadd.s32 1, %s37
      %s49 = scalar_select %p46, %s48, %s37
      %p50 = scmp.ge.s32.totalorder %s49, 1
      %s51 = scalar_select %p50, 0, %s49
      %s52 = sadd.s32 1, %s36
      %s53 = scalar_select %p50, %s52, %s36
      %p54 = scmp.ge.s32.totalorder %s53, 2
      %s55 = scalar_select %p54, 0, %s53
      %s56 = sshra.s32 %s38, 7
      %s57 = sand.u32 %s38, 127
      %s58 = sadd.s32 %s56, %s36
      %s59 = smul.u32 %s58, 128
      %s60 = sshra.s32 %s38, 7
      %s61 = sand.u32 %s38, 127
      %s62 = sadd.s32 %s59, %s61
      %s63 = sld [smem:[#allocation3 + %s62]]
      %s64 = sshra.s32 %s47, 7
      %s65 = sand.u32 %s47, 127
      %s66 = sadd.s32 %s64, %s55
      %s67 = smul.u32 %s66, 128
      %s68 = sshra.s32 %s47, 7
      %s69 = sand.u32 %s47, 127
      %s70 = sadd.s32 %s67, %s69
      %s71 = sld [smem:[#allocation3 + %s70]]
      %s72 = ssub.s32 %s36, %s55
      %s73 = ssub.s32 %s63, %s71
      %s74 = sor.u32 %s72, %s73
      %p75 = scmp.eq.s32.totalorder %s74, 0
      %s77 = sadd.s32 %s76, 1
      %s78 = scalar_select %p75, %s76, %s77
      %p81 = pneg %p75
      %p82 = scmp.eq.s32.totalorder %s29, 1
      %p83 = por %p81, %p82
      %p84 = scmp.ne.s32.totalorder %s76, %s79
      %p85 = scmp.eq.s32.totalorder %s29, 0
      %p86 = por %p84, %p85
      %p87 = scmp.ne.s32.totalorder %s76, %s79
      %p88 = scmp.eq.s32.totalorder %s34, 1
      %p89 = por %p87, %p88
      %p90 = scmp.ne.s32.totalorder %s79, %s80
      %p91 = scmp.eq.s32.totalorder %s34, 0
      %p92 = por %p90, %p91
      %p93 = scmp.ne.s32.totalorder %s79, %s80
      %p94 = scmp.eq.s32.totalorder %s35, 1
      %p95 = por %p93, %p94
      %p97 = scmp.ne.s32.totalorder %s80, %s96
      %p98 = scmp.eq.s32.totalorder %s35, 0
      %p99 = por %p97, %p98
      %s100 = sshra.s32 %s38, 7
      %s101 = sand.u32 %s38, 127
      %s102 = sadd.s32 %s100, %s36
      %s103 = smul.u32 %s102, 128
      %s104 = sshra.s32 %s38, 7
      %s105 = sand.u32 %s38, 127
      %s106 = sadd.s32 %s103, %s105
      %s107 = sld [smem:[#allocation3 + %s106]]
      %s108 = sshra.s32 %s47, 7
      %s109 = sand.u32 %s47, 127
      %s110 = sadd.s32 %s108, %s55
      %s111 = smul.u32 %s110, 128
      %s112 = sshra.s32 %s47, 7
      %s113 = sand.u32 %s47, 127
      %s114 = sadd.s32 %s111, %s113
      %s115 = sld [smem:[#allocation3 + %s114]]
      %s116 = ssub.s32 %s107, %s115
      %s117 = ssub.s32 %s37, %s51
      %s118 = sor.u32 %s116, %s117
      %p119 = scmp.eq.s32.totalorder %s118, 0
      %s121 = sadd.s32 %s120, 1
      %s122 = scalar_select %p119, %s120, %s121
      %p125 = pneg %p119
      %p126 = scmp.eq.s32.totalorder %s29, 1
      %p127 = por %p125, %p126
      %p128 = scmp.ne.s32.totalorder %s120, %s123
      %p129 = scmp.eq.s32.totalorder %s29, 0
      %p130 = por %p128, %p129
      %p131 = scmp.ne.s32.totalorder %s120, %s123
      %p132 = scmp.eq.s32.totalorder %s34, 1
      %p133 = por %p131, %p132
      %p134 = scmp.ne.s32.totalorder %s123, %s124
      %p135 = scmp.eq.s32.totalorder %s34, 0
      %p136 = por %p134, %p135
      %p137 = scmp.ne.s32.totalorder %s123, %s124
      %p138 = scmp.eq.s32.totalorder %s35, 1
      %p139 = por %p137, %p138
      %p141 = scmp.ne.s32.totalorder %s124, %s140
      %p142 = scmp.eq.s32.totalorder %s35, 0
      %p143 = por %p141, %p142
      %s144 = ssub.s32 %s36, %s55
      %s145 = ssub.s32 %s37, %s51
      %s146 = sor.u32 %s144, %s145
      %p147 = scmp.eq.s32.totalorder %s146, 0
      %s149 = sadd.s32 %s148, 1
      %s150 = scalar_select %p147, %s148, %s149
      %p153 = pneg %p147
      %p154 = scmp.eq.s32.totalorder %s29, 1
      %p155 = por %p153, %p154
      %p156 = scmp.ne.s32.totalorder %s148, %s151
      %p157 = scmp.eq.s32.totalorder %s29, 0
      %p158 = por %p156, %p157
      %p159 = scmp.ne.s32.totalorder %s148, %s151
      %p160 = scmp.eq.s32.totalorder %s34, 1
      %p161 = por %p159, %p160
      %p162 = scmp.ne.s32.totalorder %s151, %s152
      %p163 = scmp.eq.s32.totalorder %s34, 0
      %p164 = por %p162, %p163
      %p165 = scmp.ne.s32.totalorder %s151, %s152
      %p166 = scmp.eq.s32.totalorder %s35, 1
      %p167 = por %p165, %p166
      %p169 = scmp.ne.s32.totalorder %s152, %s168
      %p170 = scmp.eq.s32.totalorder %s35, 0
      %p171 = por %p169, %p170
      %p172 = scmp.le.s32.totalorder 1, %s29
      %p173 = scmp.lt.s32.totalorder %s29, 3
      %p174 = pnand %p172, %p173
      %p175 = pneg %p174
      // Predicated region
      $region9: #{tpu_custom_call.1} parent=5 // pred_check
        _
      $region10: #{tpu_custom_call.1} parent=5 // pred_check_branch
        %177 = sbr.rel (%p174) target = $region12
      $region11: #{tpu_custom_call.1} parent=5 // pred_region
        %s178 = ssub.s32 %s29, 1
      $region12: #{tpu_custom_call.1} parent=5 // pred_fallthru
        _
      %p179 = scmp.lt.s32.totalorder %s29, 2
      // Predicated region
      $region13: #{tpu_custom_call.1} parent=5 // pred_check
        %p180 = pneg %p179
      $region14: #{tpu_custom_call.1} parent=5 // pred_check_branch
        %182 = sbr.rel (%p180) target = $region16
      $region15: #{tpu_custom_call.1} parent=5 // pred_region
        // Predicated region
        $region17: #{tpu_custom_call.1} parent=15 // pred_check
          %p183 = pneg %p86
        $region18: #{tpu_custom_call.1} parent=15 // pred_check_branch
          %185 = sbr.rel (%p183) target = $region20
        $region19: #{tpu_custom_call.1} parent=15 // pred_region
          %s186 = sand.u32 %s76, 1
          %s187 = scalar_lea.sflag [#allocation6], %s186
          %s188 = sand.u32 %s76, 1
          %s189 = smul.addr %s188, 256
          %s190 = scalar_lea.vmem [#allocation5], %s189
          %s191 = sshra.s32 %s38, 7
          %s192 = sand.u32 %s38, 127
          %s193 = sadd.s32 %s191, %s36
          %s194 = smul.u32 %s193, 128
          %s195 = sshra.s32 %s38, 7
          %s196 = sand.u32 %s38, 127
          %s197 = sadd.s32 %s194, %s196
          %s198 = sld [smem:[#allocation3 + %s197]]
          %s199 = smul.u32 16, %s36
          %s200 = smul.u32 2, %s198
          %s202 = ssub.s32 4096, 4096
          %203 = vsyncadd %s187, %s202
          %s204 = smul.addr %s199, 2
          %s205 = sadd.s32 %s200, %s204
          %s206 = smul.addr %s205, 128
          %s207 = scalar_lea.hbm %s2, %s206
          %s208 = sshll.u32 %s190, 4
          %s209 = int_to_ptr.vmem [resolvable:$true] %s208
          %214 = dma.hbm_to_vmem [thread:$0]  %s207, 4096, %s209, %s187, 256, 256, 16
        $region20: #{tpu_custom_call.1} parent=15 // pred_fallthru
          _
        // Predicated region
        $region21: #{tpu_custom_call.1} parent=15 // pred_check
          %p215 = pneg %p130
        $region22: #{tpu_custom_call.1} parent=15 // pred_check_branch
          %217 = sbr.rel (%p215) target = $region24
        $region23: #{tpu_custom_call.1} parent=15 // pred_region
          %s218 = sand.u32 %s120, 1
          %s219 = scalar_lea.sflag [#allocation9], %s218
          %s220 = sand.u32 %s120, 1
          %s221 = smul.addr %s220, 256
          %s222 = scalar_lea.vmem [#allocation8], %s221
          %s223 = sshra.s32 %s38, 7
          %s224 = sand.u32 %s38, 127
          %s225 = sadd.s32 %s223, %s36
          %s226 = smul.u32 %s225, 128
          %s227 = sshra.s32 %s38, 7
          %s228 = sand.u32 %s38, 127
          %s229 = sadd.s32 %s226, %s228
          %s230 = sld [smem:[#allocation3 + %s229]]
          %s231 = smul.u32 32, %s230
          %s233 = ssub.s32 4096, 4096
          %234 = vsyncadd %s219, %s233
          %s235 = sadd.s32 %s37, %s231
          %s236 = smul.addr %s235, 128
          %s237 = scalar_lea.hbm %s3, %s236
          %s238 = sshll.u32 %s222, 4
          %s239 = int_to_ptr.vmem [resolvable:$true] %s238
          %244 = dma.hbm_to_vmem [thread:$0]  %s237, 4096, %s239, %s219, 128, 128, 8
        $region24: #{tpu_custom_call.1} parent=15 // pred_fallthru
          _
      $region16: #{tpu_custom_call.1} parent=5 // pred_fallthru
        _
      %p245 = scmp.le.s32.totalorder 1, %s29
      %p246 = scmp.lt.s32.totalorder %s29, 3
      %p247 = pnand %p245, %p246
      %p248 = pneg %p247
      // Predicated region
      $region25: #{tpu_custom_call.1} parent=5 // pred_check
        _
      $region26: #{tpu_custom_call.1} parent=5 // pred_check_branch
        %250 = sbr.rel (%p247) target = $region28
      $region27: #{tpu_custom_call.1} parent=5 // pred_region
        %s251 = ssub.s32 %s29, 1
        %s252 = sand.u32 %s79, 1
        %s253 = scalar_lea.sflag [#allocation6], %s252
        %s254 = sand.u32 %s79, 1
        %s255 = smul.addr %s254, 256
        %s256 = scalar_lea.vmem [#allocation5], %s255
        // Predicated region
        $region29: #{tpu_custom_call.1} parent=27 // pred_check
          %p257 = pneg %p92
        $region30: #{tpu_custom_call.1} parent=27 // pred_check_branch
          %259 = sbr.rel (%p257) target = $region32
        $region31: #{tpu_custom_call.1} parent=27 // pred_region
          %260 = dma.done %s253, 4096
        $region32: #{tpu_custom_call.1} parent=27 // pred_fallthru
          _
        %s261 = sand.u32 %s123, 1
        %s262 = scalar_lea.sflag [#allocation9], %s261
        %s263 = sand.u32 %s123, 1
        %s264 = smul.addr %s263, 256
        %s265 = scalar_lea.vmem [#allocation8], %s264
        // Predicated region
        $region33: #{tpu_custom_call.1} parent=27 // pred_check
          %p266 = pneg %p136
        $region34: #{tpu_custom_call.1} parent=27 // pred_check_branch
          %268 = sbr.rel (%p266) target = $region36
        $region35: #{tpu_custom_call.1} parent=27 // pred_region
          %269 = dma.done %s262, 4096
        $region36: #{tpu_custom_call.1} parent=27 // pred_fallthru
          _
        %s270 = sand.u32 %s79, 1
        %s271 = scalar_lea.sflag [#allocation6], %s270
        %s272 = sand.u32 %s79, 1
        %s273 = smul.addr %s272, 256
        %s274 = scalar_lea.vmem [#allocation5], %s273
        %p275 = pneg %p92
        %p276 = pneg %p89
        %s277 = sand.u32 %s123, 1
        %s278 = scalar_lea.sflag [#allocation9], %s277
        %s279 = sand.u32 %s123, 1
        %s280 = smul.addr %s279, 256
        %s281 = scalar_lea.vmem [#allocation8], %s280
        %p282 = pneg %p136
        %p283 = pneg %p133
        %p284 = pneg %p164
        %p285 = pneg %p161
        %s286 = sand.u32 %s151, 1
        %s287 = scalar_lea.sflag [#allocation7], %s286
        %s288 = sand.u32 %s151, 1
        %s289 = smul.addr %s288, 128
        %s290 = scalar_lea.vmem [#allocation10], %s289
        %s291 = sshra.s32 %s41, 7
        %s292 = sand.u32 %s41, 127
        %s293 = sadd.s32 %s291, %s39
        %s294 = smul.u32 %s293, 128
        %s295 = sshra.s32 %s41, 7
        %s296 = sand.u32 %s41, 127
        %s297 = sadd.s32 %s294, %s296
        %s298 = sld [smem:[#allocation3 + %s297]]
        %s299 = smul.u32 16, %s39
        %s300 = smul.u32 2, %s298
        %s301 = sshra.s32 %s41, 7
        %s302 = sand.u32 %s41, 127
        %s303 = sadd.s32 %s301, %s39
        %s304 = smul.u32 %s303, 128
        %s305 = sshra.s32 %s41, 7
        %s306 = sand.u32 %s41, 127
        %s307 = sadd.s32 %s304, %s306
        %s308 = sld [smem:[#allocation3 + %s307]]
        %s309 = smul.u32 32, %s308
        %s310 = smul.u32 16, %s39
        %p312 = scmp.eq.s32.totalorder %s41, 0
        // Predicated region
        $region37: #{tpu_custom_call.1} parent=27 // pred_check
          %p313 = pneg %p312
        $region38: #{tpu_custom_call.1} parent=27 // pred_check_branch
          %315 = sbr.rel (%p313) target = $region40
        $region39: #{tpu_custom_call.1} parent=27 // pred_region
          %316 = vst [vmem:[%s290] sm:$0xff] 0.0
          %317 = vst [vmem:[%s290 + $0x8] sm:$0xff] 0.0
          %318 = vst [vmem:[%s290 + $0x10] sm:$0xff] 0.0
          %319 = vst [vmem:[%s290 + $0x18] sm:$0xff] 0.0
          %320 = vst [vmem:[%s290 + $0x20] sm:$0xff] 0.0
          %321 = vst [vmem:[%s290 + $0x28] sm:$0xff] 0.0
          %322 = vst [vmem:[%s290 + $0x30] sm:$0xff] 0.0
          %323 = vst [vmem:[%s290 + $0x38] sm:$0xff] 0.0
          %324 = vst [vmem:[%s290 + $0x40] sm:$0xff] 0.0
          %325 = vst [vmem:[%s290 + $0x48] sm:$0xff] 0.0
          %326 = vst [vmem:[%s290 + $0x50] sm:$0xff] 0.0
          %327 = vst [vmem:[%s290 + $0x58] sm:$0xff] 0.0
          %328 = vst [vmem:[%s290 + $0x60] sm:$0xff] 0.0
          %329 = vst [vmem:[%s290 + $0x68] sm:$0xff] 0.0
          %330 = vst [vmem:[%s290 + $0x70] sm:$0xff] 0.0
          %331 = vst [vmem:[%s290 + $0x78] sm:$0xff] 0.0
        $region40: #{tpu_custom_call.1} parent=27 // pred_fallthru
          _
        %s332 = sld [smem:[#allocation4 + %s39]]
        %p333 = scmp.lt.s32.totalorder %s41, %s332
        // Predicated region
        $region41: #{tpu_custom_call.1} parent=27 // pred_check
          %p334 = pneg %p333
        $region42: #{tpu_custom_call.1} parent=27 // pred_check_branch
          %336 = sbr.rel (%p334) target = $region44
        $region43: #{tpu_custom_call.1} parent=27 // pred_region
          %v337 = vld [vmem:[%s265] sm:$0xff]
          %v338 = vld [vmem:[%s265 + $0x8] sm:$0xff]
          %v339 = vld [vmem:[%s265 + $0x10] sm:$0xff]
          %v340 = vld [vmem:[%s265 + $0x18] sm:$0xff]
          %v341 = vld [vmem:[%s265 + $0x20] sm:$0xff]
          %v342 = vld [vmem:[%s265 + $0x28] sm:$0xff]
          %v343 = vld [vmem:[%s265 + $0x30] sm:$0xff]
          %v344 = vld [vmem:[%s265 + $0x38] sm:$0xff]
          %v345 = vld [vmem:[%s265 + $0x40] sm:$0xff]
          %v346 = vld [vmem:[%s265 + $0x48] sm:$0xff]
          %v347 = vld [vmem:[%s265 + $0x50] sm:$0xff]
          %v348 = vld [vmem:[%s265 + $0x58] sm:$0xff]
          %v349 = vld [vmem:[%s265 + $0x60] sm:$0xff]
          %v350 = vld [vmem:[%s265 + $0x68] sm:$0xff]
          %v351 = vld [vmem:[%s265 + $0x70] sm:$0xff]
          %v352 = vld [vmem:[%s265 + $0x78] sm:$0xff]
          %v353 = vld [vmem:[%s265 + $0x80] sm:$0xff]
          %v354 = vld [vmem:[%s265 + $0x88] sm:$0xff]
          %v355 = vld [vmem:[%s265 + $0x90] sm:$0xff]
          %v356 = vld [vmem:[%s265 + $0x98] sm:$0xff]
          %v357 = vld [vmem:[%s265 + $0xa0] sm:$0xff]
          %v358 = vld [vmem:[%s265 + $0xa8] sm:$0xff]
          %v359 = vld [vmem:[%s265 + $0xb0] sm:$0xff]
          %v360 = vld [vmem:[%s265 + $0xb8] sm:$0xff]
          %v361 = vld [vmem:[%s265 + $0xc0] sm:$0xff]
          %v362 = vld [vmem:[%s265 + $0xc8] sm:$0xff]
          %v363 = vld [vmem:[%s265 + $0xd0] sm:$0xff]
          %v364 = vld [vmem:[%s265 + $0xd8] sm:$0xff]
          %v365 = vld [vmem:[%s265 + $0xe0] sm:$0xff]
          %v366 = vld [vmem:[%s265 + $0xe8] sm:$0xff]
          %v367 = vld [vmem:[%s265 + $0xf0] sm:$0xff]
          %v368 = vld [vmem:[%s265 + $0xf8] sm:$0xff]
          %v369 = vld [vmem:[%s290] sm:$0xff]
          %v370 = vld [vmem:[%s290 + $0x8] sm:$0xff]
          %v371 = vld [vmem:[%s290 + $0x10] sm:$0xff]
          %v372 = vld [vmem:[%s290 + $0x18] sm:$0xff]
          %v373 = vld [vmem:[%s290 + $0x20] sm:$0xff]
          %v374 = vld [vmem:[%s290 + $0x28] sm:$0xff]
          %v375 = vld [vmem:[%s290 + $0x30] sm:$0xff]
          %v376 = vld [vmem:[%s290 + $0x38] sm:$0xff]
          %v377 = vld [vmem:[%s290 + $0x40] sm:$0xff]
          %v378 = vld [vmem:[%s290 + $0x48] sm:$0xff]
          %v379 = vld [vmem:[%s290 + $0x50] sm:$0xff]
          %v380 = vld [vmem:[%s290 + $0x58] sm:$0xff]
          %v381 = vld [vmem:[%s290 + $0x60] sm:$0xff]
          %v382 = vld [vmem:[%s290 + $0x68] sm:$0xff]
          %v383 = vld [vmem:[%s290 + $0x70] sm:$0xff]
          %v384 = vld [vmem:[%s290 + $0x78] sm:$0xff]
          %v385 = vld [vmem:[%s256] sm:$0xff]
          %v386 = vld [vmem:[%s256 + $0x8] sm:$0xff]
          %v387 = vld [vmem:[%s256 + $0x10] sm:$0xff]
          %v388 = vld [vmem:[%s256 + $0x18] sm:$0xff]
          %v389 = vld [vmem:[%s256 + $0x20] sm:$0xff]
          %v390 = vld [vmem:[%s256 + $0x28] sm:$0xff]
          %v391 = vld [vmem:[%s256 + $0x30] sm:$0xff]
          %v392 = vld [vmem:[%s256 + $0x38] sm:$0xff]
          %v393 = vld [vmem:[%s256 + $0x40] sm:$0xff]
          %v394 = vld [vmem:[%s256 + $0x48] sm:$0xff]
          %v395 = vld [vmem:[%s256 + $0x50] sm:$0xff]
          %v396 = vld [vmem:[%s256 + $0x58] sm:$0xff]
          %v397 = vld [vmem:[%s256 + $0x60] sm:$0xff]
          %v398 = vld [vmem:[%s256 + $0x68] sm:$0xff]
          %v399 = vld [vmem:[%s256 + $0x70] sm:$0xff]
          %v400 = vld [vmem:[%s256 + $0x78] sm:$0xff]
          %v401 = vld [vmem:[%s256 + $0x80] sm:$0xff]
          %v402 = vld [vmem:[%s256 + $0x88] sm:$0xff]
          %v403 = vld [vmem:[%s256 + $0x90] sm:$0xff]
          %v404 = vld [vmem:[%s256 + $0x98] sm:$0xff]
          %v405 = vld [vmem:[%s256 + $0xa0] sm:$0xff]
          %v406 = vld [vmem:[%s256 + $0xa8] sm:$0xff]
          %v407 = vld [vmem:[%s256 + $0xb0] sm:$0xff]
          %v408 = vld [vmem:[%s256 + $0xb8] sm:$0xff]
          %v409 = vld [vmem:[%s256 + $0xc0] sm:$0xff]
          %v410 = vld [vmem:[%s256 + $0xc8] sm:$0xff]
          %v411 = vld [vmem:[%s256 + $0xd0] sm:$0xff]
          %v412 = vld [vmem:[%s256 + $0xd8] sm:$0xff]
          %v413 = vld [vmem:[%s256 + $0xe0] sm:$0xff]
          %v414 = vld [vmem:[%s256 + $0xe8] sm:$0xff]
          %v415 = vld [vmem:[%s256 + $0xf0] sm:$0xff]
          %v416 = vld [vmem:[%s256 + $0xf8] sm:$0xff]
          %v417 = vpack.c.bf16 %v387, %v385
          %v418 = vpack.c.bf16 %v388, %v386
          %v419 = vpack.c.bf16 %v391, %v389
          %v420 = vpack.c.bf16 %v392, %v390
          %v421 = vpack.c.bf16 %v395, %v393
          %v422 = vpack.c.bf16 %v396, %v394
          %v423 = vpack.c.bf16 %v399, %v397
          %v424 = vpack.c.bf16 %v400, %v398
          %v425 = vpack.c.bf16 %v403, %v401
          %v426 = vpack.c.bf16 %v404, %v402
          %v427 = vpack.c.bf16 %v407, %v405
          %v428 = vpack.c.bf16 %v408, %v406
          %v429 = vpack.c.bf16 %v411, %v409
          %v430 = vpack.c.bf16 %v412, %v410
          %v431 = vpack.c.bf16 %v415, %v413
          %v432 = vpack.c.bf16 %v416, %v414
          %v433 = vpack.c.bf16 %v338, %v337
          %v434 = vpack.c.bf16 %v340, %v339
          %v435 = vpack.c.bf16 %v342, %v341
          %v436 = vpack.c.bf16 %v344, %v343
          %v437 = vpack.c.bf16 %v346, %v345
          %v438 = vpack.c.bf16 %v348, %v347
          %v439 = vpack.c.bf16 %v350, %v349
          %v440 = vpack.c.bf16 %v352, %v351
          %v441 = vpack.c.bf16 %v354, %v353
          %v442 = vpack.c.bf16 %v356, %v355
          %v443 = vpack.c.bf16 %v358, %v357
          %v444 = vpack.c.bf16 %v360, %v359
          %v445 = vpack.c.bf16 %v362, %v361
          %v446 = vpack.c.bf16 %v364, %v363
          %v447 = vpack.c.bf16 %v366, %v365
          %v448 = vpack.c.bf16 %v368, %v367
          %449 = vmatprep.subr.bf16.mxu0 0
          %450 = vmatpush1.bf16.msra.mxu0 %v433
          %451 = vmatprep.subr.bf16.mxu0 0
          %452 = vmatpush1.bf16.msra.mxu0 %v434
          %453 = vmatprep.subr.bf16.mxu0 0
          %454 = vmatpush1.bf16.msra.mxu0 %v435
          %455 = vmatprep.subr.bf16.mxu0 0
          %456 = vmatpush1.bf16.msra.mxu0 %v436
          %457 = vmatprep.subr.bf16.mxu0 0
          %458 = vmatpush1.bf16.msra.mxu0 %v437
          %459 = vmatprep.subr.bf16.mxu0 0
          %460 = vmatpush1.bf16.msra.mxu0 %v438
          %461 = vmatprep.subr.bf16.mxu0 0
          %462 = vmatpush1.bf16.msra.mxu0 %v439
          %463 = vmatprep.subr.bf16.mxu0 0
          %464 = vmatpush1.bf16.msra.mxu0 %v440
          %465 = vmatprep.subr.bf16.mxu0 0
          %466 = vmatpush1.bf16.msra.mxu0 %v441
          %467 = vmatprep.subr.bf16.mxu0 0
          %468 = vmatpush1.bf16.msra.mxu0 %v442
          %469 = vmatprep.subr.bf16.mxu0 0
          %470 = vmatpush1.bf16.msra.mxu0 %v443
          %471 = vmatprep.subr.bf16.mxu0 0
          %472 = vmatpush1.bf16.msra.mxu0 %v444
          %473 = vmatprep.subr.bf16.mxu0 0
          %474 = vmatpush1.bf16.msra.mxu0 %v445
          %475 = vmatprep.subr.bf16.mxu0 0
          %476 = vmatpush1.bf16.msra.mxu0 %v446
          %477 = vmatprep.subr.bf16.mxu0 0
          %478 = vmatpush1.bf16.msra.mxu0 %v447
          %479 = vmatprep.subr.bf16.mxu0 0
          %480 = vmatpush1.bf16.msra.mxu0 %v448
          %481 = vmatprep.mubr.bf16.mxu0 %v418
          %482 = vmatmul.mubr.bf16.gmra.mrb[0].mxu0 %v417
          %v483 = vpop.f32.mrb[0].mxu0
          %v484 = vadd.f32 0.0, %v483
          %v485 = vpop.f32.mrb[0].mxu0
          %v486 = vpop.f32.mrb[0].mxu0
          %v487 = vadd.f32 0.0, %v486
          %v488 = vpop.f32.mrb[0].mxu0
          %489 = vmatprep.mubr.bf16.mxu0 %v420
          %490 = vmatmul.mubr.bf16.gmra.mrb[0].mxu0 %v419
          %v491 = vpop.f32.mrb[0].mxu0
          %v492 = vadd.f32 0.0, %v491
          %v493 = vpop.f32.mrb[0].mxu0
          %v494 = vpop.f32.mrb[0].mxu0
          %v495 = vadd.f32 0.0, %v494
          %v496 = vpop.f32.mrb[0].mxu0
          %497 = vmatprep.mubr.bf16.mxu0 %v422
          %498 = vmatmul.mubr.bf16.gmra.mrb[0].mxu0 %v421
          %v499 = vpop.f32.mrb[0].mxu0
          %v500 = vadd.f32 0.0, %v499
          %v501 = vpop.f32.mrb[0].mxu0
          %v502 = vpop.f32.mrb[0].mxu0
          %v503 = vadd.f32 0.0, %v502
          %v504 = vpop.f32.mrb[0].mxu0
          %505 = vmatprep.mubr.bf16.mxu0 %v424
          %506 = vmatmul.mubr.bf16.gmra.mrb[0].mxu0 %v423
          %v507 = vpop.f32.mrb[0].mxu0
          %v508 = vadd.f32 0.0, %v507
          %v509 = vpop.f32.mrb[0].mxu0
          %v510 = vpop.f32.mrb[0].mxu0
          %v511 = vadd.f32 0.0, %v510
          %v512 = vpop.f32.mrb[0].mxu0
          %513 = vmatprep.mubr.bf16.mxu0 %v426
          %514 = vmatmul.mubr.bf16.gmra.mrb[0].mxu0 %v425
          %v515 = vpop.f32.mrb[0].mxu0
          %v516 = vadd.f32 0.0, %v515
          %v517 = vpop.f32.mrb[0].mxu0
          %v518 = vpop.f32.mrb[0].mxu0
          %v519 = vadd.f32 0.0, %v518
          %v520 = vpop.f32.mrb[0].mxu0
          %521 = vmatprep.mubr.bf16.mxu0 %v428
          %522 = vmatmul.mubr.bf16.gmra.mrb[0].mxu0 %v427
          %v523 = vpop.f32.mrb[0].mxu0
          %v524 = vadd.f32 0.0, %v523
          %v525 = vpop.f32.mrb[0].mxu0
          %v526 = vpop.f32.mrb[0].mxu0
          %v527 = vadd.f32 0.0, %v526
          %v528 = vpop.f32.mrb[0].mxu0
          %529 = vmatprep.mubr.bf16.mxu0 %v430
          %530 = vmatmul.mubr.bf16.gmra.mrb[0].mxu0 %v429
          %v531 = vpop.f32.mrb[0].mxu0
          %v532 = vadd.f32 0.0, %v531
          %v533 = vpop.f32.mrb[0].mxu0
          %v534 = vpop.f32.mrb[0].mxu0
          %v535 = vadd.f32 0.0, %v534
          %v536 = vpop.f32.mrb[0].mxu0
          %537 = vmatprep.mubr.bf16.mxu0 %v432
          %538 = vmatmul.mubr.bf16.gmra.mrb[0].mxu0 %v431
          %v539 = vpop.f32.mrb[0].mxu0
          %v540 = vadd.f32 0.0, %v539
          %v541 = vpop.f32.mrb[0].mxu0
          %v542 = vpop.f32.mrb[0].mxu0
          %v543 = vadd.f32 0.0, %v542
          %v544 = vpop.f32.mrb[0].mxu0
          %545 = vdwg.mxu0
          %v546 = vadd.f32 %v369, %v484
          %v547 = vadd.f32 %v370, %v487
          %v548 = vadd.f32 %v371, %v492
          %v549 = vadd.f32 %v372, %v495
          %v550 = vadd.f32 %v373, %v500
          %v551 = vadd.f32 %v374, %v503
          %v552 = vadd.f32 %v375, %v508
          %v553 = vadd.f32 %v376, %v511
          %v554 = vadd.f32 %v377, %v516
          %v555 = vadd.f32 %v378, %v519
          %v556 = vadd.f32 %v379, %v524
          %v557 = vadd.f32 %v380, %v527
          %v558 = vadd.f32 %v381, %v532
          %v559 = vadd.f32 %v382, %v535
          %v560 = vadd.f32 %v383, %v540
          %v561 = vadd.f32 %v384, %v543
          %562 = vst [vmem:[%s290] sm:$0xff] %v546
          %563 = vst [vmem:[%s290 + $0x8] sm:$0xff] %v547
          %564 = vst [vmem:[%s290 + $0x10] sm:$0xff] %v548
          %565 = vst [vmem:[%s290 + $0x18] sm:$0xff] %v549
          %566 = vst [vmem:[%s290 + $0x20] sm:$0xff] %v550
          %567 = vst [vmem:[%s290 + $0x28] sm:$0xff] %v551
          %568 = vst [vmem:[%s290 + $0x30] sm:$0xff] %v552
          %569 = vst [vmem:[%s290 + $0x38] sm:$0xff] %v553
          %570 = vst [vmem:[%s290 + $0x40] sm:$0xff] %v554
          %571 = vst [vmem:[%s290 + $0x48] sm:$0xff] %v555
          %572 = vst [vmem:[%s290 + $0x50] sm:$0xff] %v556
          %573 = vst [vmem:[%s290 + $0x58] sm:$0xff] %v557
          %574 = vst [vmem:[%s290 + $0x60] sm:$0xff] %v558
          %575 = vst [vmem:[%s290 + $0x68] sm:$0xff] %v559
          %576 = vst [vmem:[%s290 + $0x70] sm:$0xff] %v560
          %577 = vst [vmem:[%s290 + $0x78] sm:$0xff] %v561
        $region44: #{tpu_custom_call.1} parent=27 // pred_fallthru
          _
        %s578 = sand.u32 %s151, 1
        %s579 = scalar_lea.sflag [#allocation7], %s578
        %s580 = sand.u32 %s151, 1
        %s581 = smul.addr %s580, 128
        %s582 = scalar_lea.vmem [#allocation10], %s581
        // Predicated region
        $region45: #{tpu_custom_call.1} parent=27 // pred_check
          %p583 = pneg %p161
        $region46: #{tpu_custom_call.1} parent=27 // pred_check_branch
          %585 = sbr.rel (%p583) target = $region48
        $region47: #{tpu_custom_call.1} parent=27 // pred_region
          %s586 = smul.u32 16, %s39
          %s588 = ssub.s32 2048, 2048
          %589 = vsyncadd %s579, %s588
          %s590 = sadd.s32 %s40, %s586
          %s591 = smul.addr %s590, 128
          %s592 = scalar_lea.hbm %s4, %s591
          %s593 = sshll.u32 %s582, 4
          %s594 = int_to_ptr.vmem [resolvable:$true] %s593
          %599 = dma.vmem_to_hbm [thread:$0]  %s594, 2048, %s592, %s579, 128, 128, 8
        $region48: #{tpu_custom_call.1} parent=27 // pred_fallthru
          _
      $region28: #{tpu_custom_call.1} parent=5 // pred_fallthru
        _
      %p600 = scmp.le.s32.totalorder 2, %s29
      // Predicated region
      $region49: #{tpu_custom_call.1} parent=5 // pred_check
        %p601 = pneg %p600
      $region50: #{tpu_custom_call.1} parent=5 // pred_check_branch
        %603 = sbr.rel (%p601) target = $region52
      $region51: #{tpu_custom_call.1} parent=5 // pred_region
        %s604 = ssub.s32 %s29, 2
        // Predicated region
        $region53: #{tpu_custom_call.1} parent=51 // pred_check
          %p605 = pneg %p167
        $region54: #{tpu_custom_call.1} parent=51 // pred_check_branch
          %607 = sbr.rel (%p605) target = $region56
        $region55: #{tpu_custom_call.1} parent=51 // pred_region
          %s608 = sand.u32 %s152, 1
          %s609 = scalar_lea.sflag [#allocation7], %s608
          %s610 = sand.u32 %s152, 1
          %s611 = smul.addr %s610, 128
          %s612 = scalar_lea.vmem [#allocation10], %s611
          %613 = dma.done %s609, 2048
        $region56: #{tpu_custom_call.1} parent=51 // pred_fallthru
          _
      $region52: #{tpu_custom_call.1} parent=5 // pred_fallthru
        _
    $region6: #{tpu_custom_call.1} parent=1 // loop_footer
      %s33 = sadd.s32 1, %s29
    $region7: #{tpu_custom_call.1} parent=1 // loop_footer_branch
      %28 = sbr.rel target = $region3
    $region8: #{tpu_custom_call.1} parent=1 // loop_exit
      _
    %614 = vsyncpa [#allocation6], 1
    %s615 = scalar_lea.sflag [#allocation6], 1
    %616 = vsyncpa %s615, 1
    %617 = vsyncpa [#allocation9], 1
    %s618 = scalar_lea.sflag [#allocation9], 1
    %619 = vsyncpa %s618, 1
    %620 = vsyncpa [#allocation7], 1
    %s621 = scalar_lea.sflag [#allocation7], 1
    %622 = vsyncpa %s621, 1

</llo_original>
